<compile_context>
chip_gen: v5e
topology: v5e:2x2
jax: 0.10.0
libtpu: 0.0.40
codegen_flags: <defaults>
</compile_context>

<pallas_src>
import functools

import jax
import jax.numpy as jnp
from jax.experimental import pallas as pl
from jax.experimental.pallas import tpu as pltpu


# ----------------------------------------------------------------------------
# helpers
# ----------------------------------------------------------------------------
def _round_up(x, m):
    return ((x + m - 1) // m) * m


def _pad2(a, rows, cols):
    return jnp.pad(a, ((0, rows - a.shape[0]), (0, cols - a.shape[1])))


def _bitonic_sort_desc(slices):
    """Bitonic sorting network over a static list of equally-shaped tiles;
    descending per channel.  len(slices) must be a power of two."""
    s = list(slices)
    n = len(s)
    k = 2
    while k <= n:
        j = k // 2
        while j >= 1:
            for i in range(n):
                l = i ^ j
                if l > i:
                    a, b = s[i], s[l]
                    if (i & k) == 0:           # descending sub-block
                        s[i], s[l] = jnp.maximum(a, b), jnp.minimum(a, b)
                    else:                      # ascending sub-block
                        s[i], s[l] = jnp.minimum(a, b), jnp.maximum(a, b)
            j //= 2
        k *= 2
    return s


def _sort_network_desc(slices):
    """Descending per-channel sort of K tiles.  Non-power-of-two K is padded with
    large-negative sentinel tiles (they sort last and are never read back)."""
    K = len(slices)
    Kp = pl.next_power_of_2(K)
    if Kp != K:
        sentinel = jnp.full_like(slices[0], -3.0e38)
        slices = list(slices) + [sentinel] * (Kp - K)
    return _bitonic_sort_desc(slices)[:K]


# ----------------------------------------------------------------------------
# Pallas kernels
# ----------------------------------------------------------------------------
def _linear_kernel(x_ref, w_ref, b_ref, o_ref):
    o_ref[...] = (
        jnp.dot(x_ref[...], w_ref[...], preferred_element_type=jnp.float32)
        + b_ref[...]
    ).astype(o_ref.dtype)


def linear_pallas(x, w, b, *, tn):
    """y = x @ w + b over node tiles (lane-dense dout)."""
    N, din = x.shape
    dout = w.shape[1]
    return pl.pallas_call(
        _linear_kernel,
        out_shape=jax.ShapeDtypeStruct((N, dout), jnp.float32),
        grid_spec=pltpu.PrefetchScalarGridSpec(
            num_scalar_prefetch=0,
            grid=(N // tn,),
            in_specs=[
                pl.BlockSpec((tn, din), lambda i: (i, 0)),
                pl.BlockSpec((din, dout), lambda i: (0, 0)),
                pl.BlockSpec((1, dout), lambda i: (0, 0)),
            ],
            out_specs=pl.BlockSpec((tn, dout), lambda i: (i, 0)),
        ),
        compiler_params=pltpu.CompilerParams(
            dimension_semantics=("parallel",),
            vmem_limit_bytes=32 * 1024 * 1024),
    )(x, w, b)


def _sortconv_kernel(nbidx_ref, nbmask_ref, x_ref, wself_ref, wagg_ref, bias_ref,
                     posw_ref, gamma_ref, beta_ref, *rest,
                     K, tn, chunk, d_real, add_residual, fuse_head):
    """SortConv + LayerNorm (+ residual) [+ fused GNNHead] for one node tile.

    nbidx_ref/nbmask_ref : SMEM (K, Np)   scalar-prefetched neighbor table / mask
    x_ref                : VMEM (Np, Dp)  full node-feature matrix (resident)
    wself/wagg           : (Dp, Dp)       combine weights
    posw_ref             : (K, Dp)        learned weights over sorted slots
    """
    if fuse_head:
        headw_ref, headb_ref, o_ref, agg_scr, nb_scr = rest
    else:
        headw_ref = headb_ref = None
        o_ref, agg_scr, nb_scr = rest

    Dp = x_ref.shape[1]
    tile = pl.program_id(0)
    row0 = pl.multiple_of(tile * tn, tn)

    x_tile = x_ref[pl.ds(row0, tn), :]                       # (tn, Dp) self features

    # Self matmul issued first: it occupies the MXU slot while the gather + sort
    # below run on the scalar/vector/memory slots (overlapped, not serialized).
    h = jnp.dot(x_tile, wself_ref[...], preferred_element_type=jnp.float32)

    posw = posw_ref[...]                                     # (K, Dp)
    nchunks = tn // chunk

    def chunk_body(c, carry):
        cbase = pl.multiple_of(c * chunk, chunk)

        # -- in-kernel neighbor gather: dynamic (1, Dp) VMEM row reads.
        #    Blank (masked) slots multiply by 0 => blank vector == 0.
        for r in range(chunk):
            g = row0 + cbase + r
            for k in range(K):
                src = nbidx_ref[k, g]
                m = nbmask_ref[k, g]
                d = k * chunk + r
                nb_scr[d:d + 1, :] = x_ref[pl.ds(src, 1), :] * m

        # -- per-channel descending sort of the K-slot neighborhood (row chunk
        #    small enough that all compare-exchange operands stay in vregs).
        s = _sort_network_desc(
            [nb_scr[k * chunk:(k + 1) * chunk, :] for k in range(K)])

        # -- learned per-slot weighting, tree-reduced.
        terms = [posw[k:k + 1, :] * s[k] for k in range(K)]
        while len(terms) > 1:
            nxt = [terms[j] + terms[j + 1] for j in range(0, len(terms) - 1, 2)]
            if len(terms) % 2:
                nxt.append(terms[-1])
            terms = nxt
        agg_scr[pl.ds(cbase, chunk), :] = terms[0]
        return carry

    jax.lax.fori_loop(0, nchunks, chunk_body, 0)

    # Aggregated-neighborhood matmul + bias (one big MXU dot per tile).
    h = h + jnp.dot(agg_scr[...], wagg_ref[...], preferred_element_type=jnp.float32)
    h = h + bias_ref[...]

    # LayerNorm over the d_real true features.  Padded lanes of h are exactly
    # zero, so full-lane sums only need a closed-form correction for the pad.
    inv_d = 1.0 / d_real
    mean = jnp.sum(h, axis=-1, keepdims=True) * inv_d
    diff = h - mean
    ssq = jnp.sum(diff * diff, axis=-1, keepdims=True) - (Dp - d_real) * mean * mean
    o = diff * jax.lax.rsqrt(ssq * inv_d + 1e-5) * gamma_ref[...] + beta_ref[...]

    # Dropout is identity in eval mode; residual skip for layers i > 0.
    if add_residual:
        o = o + x_tile

    # GNNHead fused into the last conv (lane-dense padded output).
    if fuse_head:
        o = jnp.dot(o, headw_ref[...], preferred_element_type=jnp.float32) + headb_ref[...]

    o_ref[...] = o.astype(o_ref.dtype)


def sortconv_layer(x, nb_idx_kn, nb_maskf_kn, p, *, d_real, add_residual,
                   fuse_head, head, tn, chunk, K):
    Np, Dp = x.shape
    dout = head["w"].shape[1] if fuse_head else Dp

    in_specs = [
        pl.BlockSpec((Np, Dp), lambda i, *_: (0, 0)),        # x (full, VMEM resident)
        pl.BlockSpec((Dp, Dp), lambda i, *_: (0, 0)),        # w_self
        pl.BlockSpec((Dp, Dp), lambda i, *_: (0, 0)),        # w_agg
        pl.BlockSpec((1, Dp), lambda i, *_: (0, 0)),         # bias
        pl.BlockSpec((K, Dp), lambda i, *_: (0, 0)),         # pos_w
        pl.BlockSpec((1, Dp), lambda i, *_: (0, 0)),         # ln_gamma
        pl.BlockSpec((1, Dp), lambda i, *_: (0, 0)),         # ln_beta
    ]
    args = [x, p["w_self"], p["w_agg"], p["bias"], p["pos_w"],
            p["ln_gamma"], p["ln_beta"]]
    if fuse_head:
        in_specs += [
            pl.BlockSpec((Dp, dout), lambda i, *_: (0, 0)),
            pl.BlockSpec((1, dout), lambda i, *_: (0, 0)),
        ]
        args += [head["w"], head["b"]]

    kern = functools.partial(
        _sortconv_kernel, K=K, tn=tn, chunk=chunk, d_real=d_real,
        add_residual=add_residual, fuse_head=fuse_head)

    return pl.pallas_call(
        kern,
        out_shape=jax.ShapeDtypeStruct((Np, dout), jnp.float32),
        grid_spec=pltpu.PrefetchScalarGridSpec(
            num_scalar_prefetch=2,                           # nb_idx, nb_mask -> SMEM
            grid=(Np // tn,),
            in_specs=in_specs,
            out_specs=pl.BlockSpec((tn, dout), lambda i, *_: (i, 0)),
            scratch_shapes=[
                pltpu.VMEM((tn, Dp), jnp.float32),           # agg accumulator
                pltpu.VMEM((K * chunk, Dp), jnp.float32),    # gathered nb chunk
            ],
        ),
        compiler_params=pltpu.CompilerParams(
            dimension_semantics=("parallel",),
            vmem_limit_bytes=32 * 1024 * 1024),
    )(nb_idx_kn, nb_maskf_kn, *args)


# ----------------------------------------------------------------------------
# Plain-JAX glue
# ----------------------------------------------------------------------------
def prepare_padded_params(params):
    """Zero-pad all parameters to lane-dense (multiple-of-128) widths.  Zero
    padding keeps the padded feature lanes identically zero through every layer."""
    hidden = params["enc_w"].shape[1]
    dim_out = params["head_w"].shape[1]
    Dp = _round_up(hidden, 128)
    Dout_p = _round_up(dim_out, 128)
    pp = {
        "enc_w": _pad2(params["enc_w"], params["enc_w"].shape[0], Dp),
        "enc_b": _pad2(params["enc_b"], 1, Dp),
        "head": {"w": _pad2(params["head_w"], Dp, Dout_p),
                 "b": _pad2(params["head_b"], 1, Dout_p)},
        "convs": [],
    }
    for p in params["convs"]:
        pp["convs"].append({
            "w_self": _pad2(p["w_self"], Dp, Dp),
            "w_agg": _pad2(p["w_agg"], Dp, Dp),
            "bias": _pad2(p["bias"], 1, Dp),
            "pos_w": _pad2(p["pos_w"], p["pos_w"].shape[0], Dp),
            "ln_gamma": _pad2(p["ln_gamma"], 1, Dp),
            "ln_beta": _pad2(p["ln_beta"], 1, Dp),
        })
    return pp


def sort_mpnn_forward(params, x_raw, nb_idx, nb_mask, *, hidden, dim_out):
    N = x_raw.shape[0]
    K = nb_idx.shape[1]
    pp = prepare_padded_params(params)

    # Node tiling: pad N to a tile multiple; keep >=2 tiles whenever possible so
    # v7x's two TensorCores both get work (harmless on single-TC v5e/v6e).
    n8 = _round_up(N, 8)
    tn = max(8, min(256, _round_up((n8 + 1) // 2, 8)))
    Np = _round_up(n8, tn)

    # Row-chunk size for the strip-mined sort (keeps K live slices in vregs).
    if tn % 32 == 0:
        chunk = 32
    elif tn % 16 == 0:
        chunk = 16
    else:
        chunk = 8

    x_raw_p = jnp.pad(x_raw, ((0, Np - N), (0, 0)))
    nb_idx_kn = jnp.pad(nb_idx.astype(jnp.int32), ((0, Np - N), (0, 0))).T       # (K, Np)
    nb_maskf_kn = jnp.pad(nb_mask.astype(jnp.float32), ((0, Np - N), (0, 0))).T  # (K, Np)

    # Node encoder (lane-dense output).
    x = linear_pallas(x_raw_p, pp["enc_w"], pp["enc_b"], tn=tn)

    nlayers = len(pp["convs"])
    for i, lp in enumerate(pp["convs"]):
        last = i == nlayers - 1
        x = sortconv_layer(
            x, nb_idx_kn, nb_maskf_kn, lp, d_real=hidden,
            add_residual=(i > 0), fuse_head=last,
            head=(pp["head"] if last else None),
            tn=tn, chunk=chunk, K=K)

    return x[:N, :dim_out]


def sort_mpnn_reference(params, x_raw, nb_idx, nb_mask):
    """Pure-JAX reference at the logical (unpadded) sizes."""
    x = x_raw @ params["enc_w"] + params["enc_b"]
    for i, p in enumerate(params["convs"]):
        xg = jnp.take(x, nb_idx, axis=0)                      # [N, K, D]
        x_nb = jnp.where(nb_mask[:, :, None], xg, 0.0)
        s = -jnp.sort(-x_nb, axis=1)                          # descending per channel
        agg = jnp.sum(p["pos_w"][None, :, :] * s, axis=1)
        h = x @ p["w_self"] + agg @ p["w_agg"] + p["bias"]
        mean = jnp.mean(h, axis=-1, keepdims=True)
        var = jnp.mean((h - mean) ** 2, axis=-1, keepdims=True)
        o = (h - mean) * jax.lax.rsqrt(var + 1e-5) * p["ln_gamma"] + p["ln_beta"]
        x = o + x if i > 0 else o
    return x @ params["head_w"] + params["head_b"]


def init_params(key, dim_in, hidden, dim_out, num_layers, K):
    keys = jax.random.split(key, 2 + 3 * num_layers + 1)
    scale = lambda fan_in: 1.0 / jnp.sqrt(fan_in)
    params = {
        "enc_w": jax.random.normal(keys[0], (dim_in, hidden), jnp.float32) * scale(dim_in),
        "enc_b": jnp.zeros((1, hidden), jnp.float32),
        "head_w": jax.random.normal(keys[1], (hidden, dim_out), jnp.float32) * scale(hidden),
        "head_b": jnp.zeros((1, dim_out), jnp.float32),
        "convs": [],
    }
    for i in range(num_layers):
        k0, k1, k2 = keys[2 + 3 * i: 5 + 3 * i]
        params["convs"].append({
            "w_self": jax.random.normal(k0, (hidden, hidden), jnp.float32) * scale(hidden),
            "w_agg": jax.random.normal(k1, (hidden, hidden), jnp.float32) * scale(hidden),
            "bias": jnp.zeros((1, hidden), jnp.float32),
            "pos_w": jax.random.normal(k2, (K, hidden), jnp.float32) * scale(K),
            "ln_gamma": jnp.ones((1, hidden), jnp.float32),
            "ln_beta": jnp.zeros((1, hidden), jnp.float32),
        })
    return params


if __name__ == "__main__":
    N, DIM_IN, HIDDEN, DIM_OUT = 64, 16, 32, 4
    K, NUM_LAYERS = 8, 3

    key = jax.random.PRNGKey(0)
    k_x, k_p = jax.random.split(key)
    x_raw = jax.random.normal(k_x, (N, DIM_IN), jnp.float32)

    # Deterministic small graph: node i has neighbors (i+1), (i-1), (i+7) mod N.
    ids = jnp.arange(N, dtype=jnp.int32)
    real_nb = jnp.stack([(ids + 1) % N, (ids - 1) % N, (ids + 7) % N], axis=1)  # [N, 3]
    nb_idx = jnp.concatenate(
        [real_nb, jnp.zeros((N, K - 3), jnp.int32)], axis=1)                    # [N, K]
    nb_mask = jnp.concatenate(
        [jnp.ones((N, 3), bool), jnp.zeros((N, K - 3), bool)], axis=1)          # [N, K]

    params = init_params(k_p, DIM_IN, HIDDEN, DIM_OUT, NUM_LAYERS, K)

    out = sort_mpnn_forward(params, x_raw, nb_idx, nb_mask,
                            hidden=HIDDEN, dim_out=DIM_OUT)
    out = jax.block_until_ready(out)
    assert out.shape == (N, DIM_OUT) and out.dtype == jnp.float32

    ref = jax.block_until_ready(sort_mpnn_reference(params, x_raw, nb_idx, nb_mask))
    err = float(jnp.max(jnp.abs(out - ref)))
    assert jnp.allclose(out, ref, atol=2e-3, rtol=2e-3), err

    print("KERNEL_OK")
</pallas_src>

<mosaic_0001>
module attributes {stable_mosaic.version = 11 : i64} {
  func.func @_linear_kernel(%arg0: i32, %arg1: memref<32x16xf32, #tpu.memory_space<vmem>>, %arg2: memref<16x128xf32, #tpu.memory_space<vmem>>, %arg3: memref<1x128xf32, #tpu.memory_space<vmem>>, %arg4: memref<32x128xf32, #tpu.memory_space<vmem>>) attributes {dimension_semantics = [#tpu.dimension_semantics<parallel>], iteration_bounds = array<i64: 2>, scalar_prefetch = 0 : i64, scratch_operands = 0 : i64, tpu.core_type = #tpu.core_type<tc>, window_params = [{transform_indices = @transform_0, window_bounds = array<i64: 32, 16>}, {pipeline_mode = #tpu.pipeline_mode<synchronous>, transform_indices = @transform_1, window_bounds = array<i64: 16, 128>}, {pipeline_mode = #tpu.pipeline_mode<synchronous>, transform_indices = @transform_2, window_bounds = array<i64: 1, 128>}, {transform_indices = @transform_3, window_bounds = array<i64: 32, 128>}]} {
    %c0 = arith.constant 0 : index
    %c0_0 = arith.constant 0 : index
    %0 = vector.load %arg1[%c0, %c0_0] : memref<32x16xf32, #tpu.memory_space<vmem>>, vector<32x16xf32>
    %c0_1 = arith.constant 0 : index
    %c0_2 = arith.constant 0 : index
    %1 = vector.load %arg2[%c0_1, %c0_2] : memref<16x128xf32, #tpu.memory_space<vmem>>, vector<16x128xf32>
    %cst = arith.constant dense<0.000000e+00> : vector<32x128xf32>
    %2 = tpu.matmul %0, %1, %cst {dimension_numbers = #tpu.dot_dimension_numbers<[1], [0], [0], [1], [0, 0, 1, 1], [], []>} : vector<32x16xf32>, vector<16x128xf32>, vector<32x128xf32> -> vector<32x128xf32>
    %c0_3 = arith.constant 0 : index
    %c0_4 = arith.constant 0 : index
    %3 = vector.load %arg3[%c0_3, %c0_4] : memref<1x128xf32, #tpu.memory_space<vmem>>, vector<1x128xf32>
    %4 = vector.broadcast %3 : vector<1x128xf32> to vector<32x128xf32>
    %5 = arith.addf %2, %4 : vector<32x128xf32>
    %c0_5 = arith.constant 0 : index
    %c0_6 = arith.constant 0 : index
    %6 = vector.load %arg4[%c0_5, %c0_6] : memref<32x128xf32, #tpu.memory_space<vmem>>, vector<32x128xf32>
    tpu.vector_store %arg4[%c0_5, %c0_6], %5 {strides = array<i32>} : memref<32x128xf32, #tpu.memory_space<vmem>>, vector<32x128xf32>,
    return
  }
  func.func @transform_0(%arg0: i32) -> (i32, i32) {
    %c0_i32 = arith.constant 0 : i32
    %c0_i32_0 = arith.constant 0 : i32
    return %arg0, %c0_i32 : i32, i32
  }
  func.func @transform_1(%arg0: i32) -> (i32, i32) {
    %c0_i32 = arith.constant 0 : i32
    %c0_i32_0 = arith.constant 0 : i32
    %c0_i32_1 = arith.constant 0 : i32
    return %c0_i32, %c0_i32_0 : i32, i32
  }
  func.func @transform_2(%arg0: i32) -> (i32, i32) {
    %c0_i32 = arith.constant 0 : i32
    %c0_i32_0 = arith.constant 0 : i32
    %c0_i32_1 = arith.constant 0 : i32
    return %c0_i32, %c0_i32_0 : i32, i32
  }
  func.func @transform_3(%arg0: i32) -> (i32, i32) {
    %c0_i32 = arith.constant 0 : i32
    %c0_i32_0 = arith.constant 0 : i32
    return %arg0, %c0_i32 : i32, i32
  }
}

</mosaic_0001>

<llo_original>
// kernel: tpu_custom_call.1
$region0: #{tpu_custom_call.1}
  #allocation0 [shape = 'u32[]', space=smem, size = 0x4, offset = 0x4, fixed_abs, tag = 'smem constant byte address 0x4 - core index']
  #allocation1 [shape = 'u32[72,128]{1,0:T(1,128)}', space=vmem, size = 0x9000, scoped, tag = 'internal scratch']
  %s0 = inlined_call_operand.vmem [shape: f32[64,16], index: 0, kind: input, shape index: {}]
  %s1 = inlined_call_operand.vmem [shape: f32[16,128], index: 1, kind: input, shape index: {}]
  %s2 = inlined_call_operand.vmem [shape: f32[1,128], index: 2, kind: input, shape index: {}]
  %s3 = inlined_call_operand.hbm [shape: f32[64,128], index: 3, kind: output, shape index: {}]
  %s4 = sld [smem:[#allocation0]]
  $region45: #{tpu_custom_call.1} parent=0
    _
  %s6 = ssub.s32 1, %s4
  %s7 = scalar_select 0, %s6, %s4
  $region1: #{tpu_custom_call.1} parent=0
    #allocation2 [shape = 'u8[32768]{0}', space=vmem, size = 0x8000, scoped, tag = 'output window, operand 0']
    #allocation3 [shape = 's32[2]{0}', space=sflag, size = 0x8, scoped, tag = 'scoped memory for tpu_custom_call.1']
    %8 = vsyncpa [#allocation3], 0
    %s9 = scalar_lea.sflag [#allocation3], 1
    %10 = vsyncpa %s9, 0
    loop: start=0, step=1, limit=4
    $region2: #{tpu_custom_call.1} parent=1 // loop_pre_header
      _
    $region3: #{tpu_custom_call.1} parent=1 // loop_header
      %s12 = sphi 0, %s16
      %p13 = scmp.ge.s32.totalorder %s12, 4
      %s22 = sphi 0, %s24
      %s25 = sphi 0, %s22
      %s26 = sphi 0, %s25
      %s42 = sphi 0, %s26
      %s46 = sphi 0, %s46
      %s48 = sphi 0, %s46
      %s49 = sphi 0, %s48
      %s63 = sphi 0, %s49
      %s67 = sphi 0, %s67
      %s69 = sphi 0, %s67
      %s70 = sphi 0, %s69
      %s84 = sphi 0, %s70
      %s90 = sphi 0, %s92
      %s93 = sphi 0, %s90
      %s94 = sphi 0, %s93
      %s110 = sphi 0, %s94
    $region4: #{tpu_custom_call.1} parent=1 // loop_header_branch
      %15 = sbr.rel (%p13) target = $region8
    $region5: #{tpu_custom_call.1} parent=1 // loop_body
      %s17 = ssub.s32 %s12, 1
      %s18 = ssub.s32 %s12, 2
      %s19 = sadd.s32 %s12, 1
      %s20 = ssub.s32 %s12, %s19
      %p21 = scmp.eq.s32.totalorder %s20, 0
      %s23 = sadd.s32 %s22, 1
      %s24 = scalar_select %p21, %s22, %s23
      %p27 = pneg %p21
      %p28 = scmp.eq.s32.totalorder %s12, 1
      %p29 = por %p27, %p28
      %p30 = scmp.ne.s32.totalorder %s22, %s25
      %p31 = scmp.eq.s32.totalorder %s12, 0
      %p32 = por %p30, %p31
      %p33 = scmp.ne.s32.totalorder %s22, %s25
      %p34 = scmp.eq.s32.totalorder %s17, 1
      %p35 = por %p33, %p34
      %p36 = scmp.ne.s32.totalorder %s25, %s26
      %p37 = scmp.eq.s32.totalorder %s17, 0
      %p38 = por %p36, %p37
      %p39 = scmp.ne.s32.totalorder %s25, %s26
      %p40 = scmp.eq.s32.totalorder %s18, 1
      %p41 = por %p39, %p40
      %p43 = scmp.ne.s32.totalorder %s26, %s42
      %p44 = scmp.eq.s32.totalorder %s18, 0
      %p45 = por %p43, %p44
      %s47 = sadd.s32 %s46, 1
      %p50 = scmp.eq.s32.totalorder %s12, 1
      %p51 = scmp.ne.s32.totalorder %s46, %s48
      %p52 = scmp.eq.s32.totalorder %s12, 0
      %p53 = por %p51, %p52
      %p54 = scmp.ne.s32.totalorder %s46, %s48
      %p55 = scmp.eq.s32.totalorder %s17, 1
      %p56 = por %p54, %p55
      %p57 = scmp.ne.s32.totalorder %s48, %s49
      %p58 = scmp.eq.s32.totalorder %s17, 0
      %p59 = por %p57, %p58
      %p60 = scmp.ne.s32.totalorder %s48, %s49
      %p61 = scmp.eq.s32.totalorder %s18, 1
      %p62 = por %p60, %p61
      %p64 = scmp.ne.s32.totalorder %s49, %s63
      %p65 = scmp.eq.s32.totalorder %s18, 0
      %p66 = por %p64, %p65
      %s68 = sadd.s32 %s67, 1
      %p71 = scmp.eq.s32.totalorder %s12, 1
      %p72 = scmp.ne.s32.totalorder %s67, %s69
      %p73 = scmp.eq.s32.totalorder %s12, 0
      %p74 = por %p72, %p73
      %p75 = scmp.ne.s32.totalorder %s67, %s69
      %p76 = scmp.eq.s32.totalorder %s17, 1
      %p77 = por %p75, %p76
      %p78 = scmp.ne.s32.totalorder %s69, %s70
      %p79 = scmp.eq.s32.totalorder %s17, 0
      %p80 = por %p78, %p79
      %p81 = scmp.ne.s32.totalorder %s69, %s70
      %p82 = scmp.eq.s32.totalorder %s18, 1
      %p83 = por %p81, %p82
      %p85 = scmp.ne.s32.totalorder %s70, %s84
      %p86 = scmp.eq.s32.totalorder %s18, 0
      %p87 = por %p85, %p86
      %s88 = ssub.s32 %s12, %s19
      %p89 = scmp.eq.s32.totalorder %s88, 0
      %s91 = sadd.s32 %s90, 1
      %s92 = scalar_select %p89, %s90, %s91
      %p95 = pneg %p89
      %p96 = scmp.eq.s32.totalorder %s12, 1
      %p97 = por %p95, %p96
      %p98 = scmp.ne.s32.totalorder %s90, %s93
      %p99 = scmp.eq.s32.totalorder %s12, 0
      %p100 = por %p98, %p99
      %p101 = scmp.ne.s32.totalorder %s90, %s93
      %p102 = scmp.eq.s32.totalorder %s17, 1
      %p103 = por %p101, %p102
      %p104 = scmp.ne.s32.totalorder %s93, %s94
      %p105 = scmp.eq.s32.totalorder %s17, 0
      %p106 = por %p104, %p105
      %p107 = scmp.ne.s32.totalorder %s93, %s94
      %p108 = scmp.eq.s32.totalorder %s18, 1
      %p109 = por %p107, %p108
      %p111 = scmp.ne.s32.totalorder %s94, %s110
      %p112 = scmp.eq.s32.totalorder %s18, 0
      %p113 = por %p111, %p112
      %p114 = scmp.le.s32.totalorder 1, %s12
      %p115 = scmp.lt.s32.totalorder %s12, 3
      %p116 = pnand %p114, %p115
      %p117 = pneg %p116
      // Predicated region
      $region9: #{tpu_custom_call.1} parent=5 // pred_check
        _
      $region10: #{tpu_custom_call.1} parent=5 // pred_check_branch
        %119 = sbr.rel (%p116) target = $region12
      $region11: #{tpu_custom_call.1} parent=5 // pred_region
        %s120 = ssub.s32 %s12, 1
        // Predicated region
        $region13: #{tpu_custom_call.1} parent=11 // pred_check
          %p121 = pneg %p59
        $region14: #{tpu_custom_call.1} parent=11 // pred_check_branch
          %123 = sbr.rel (%p121) target = $region16
        $region15: #{tpu_custom_call.1} parent=11 // pred_region
          _
        $region16: #{tpu_custom_call.1} parent=11 // pred_fallthru
          _
        // Predicated region
        $region17: #{tpu_custom_call.1} parent=11 // pred_check
          %p124 = pneg %p80
        $region18: #{tpu_custom_call.1} parent=11 // pred_check_branch
          %126 = sbr.rel (%p124) target = $region20
        $region19: #{tpu_custom_call.1} parent=11 // pred_region
          _
        $region20: #{tpu_custom_call.1} parent=11 // pred_fallthru
          _
      $region12: #{tpu_custom_call.1} parent=5 // pred_fallthru
        _
      %p127 = scmp.lt.s32.totalorder %s12, 2
      // Predicated region
      $region21: #{tpu_custom_call.1} parent=5 // pred_check
        %p128 = pneg %p127
      $region22: #{tpu_custom_call.1} parent=5 // pred_check_branch
        %130 = sbr.rel (%p128) target = $region24
      $region23: #{tpu_custom_call.1} parent=5 // pred_region
        // Predicated region
        $region25: #{tpu_custom_call.1} parent=23 // pred_check
          %p131 = pneg %p32
        $region26: #{tpu_custom_call.1} parent=23 // pred_check_branch
          %133 = sbr.rel (%p131) target = $region28
        $region27: #{tpu_custom_call.1} parent=23 // pred_region
          %s134 = smul.u32 4, %s12
          %p135 = scmp.lt.s32.totalorder %s134, 7
          %s136 = scalar_select %p135, %s134, 7
          %s137 = smul.addr %s136, 8
          %s138 = scalar_lea.vmem %s0, %s137
          %s139 = smul.u32 4, %s12
        $region28: #{tpu_custom_call.1} parent=23 // pred_fallthru
          _
      $region24: #{tpu_custom_call.1} parent=5 // pred_fallthru
        _
      %p140 = scmp.le.s32.totalorder 1, %s12
      %p141 = scmp.lt.s32.totalorder %s12, 3
      %p142 = pnand %p140, %p141
      %p143 = pneg %p142
      // Predicated region
      $region29: #{tpu_custom_call.1} parent=5 // pred_check
        _
      $region30: #{tpu_custom_call.1} parent=5 // pred_check_branch
        %145 = sbr.rel (%p142) target = $region32
      $region31: #{tpu_custom_call.1} parent=5 // pred_region
        %s146 = ssub.s32 %s12, 1
        %s147 = smul.u32 4, %s17
        %p148 = scmp.lt.s32.totalorder %s147, 7
        %s149 = scalar_select %p148, %s147, 7
        %s150 = smul.addr %s149, 8
        %s151 = scalar_lea.vmem %s0, %s150
        %p152 = pneg %p38
        %p153 = pneg %p35
        %p154 = pneg %p59
        %p155 = pneg %p56
        %p156 = pneg %p80
        %p157 = pneg %p77
        %p158 = pneg %p106
        %p159 = pneg %p103
        %s160 = sand.u32 %s93, 1
        %s161 = scalar_lea.sflag [#allocation3], %s160
        %s162 = sand.u32 %s93, 1
        %s163 = smul.addr %s162, 32
        %s164 = scalar_lea.vmem [#allocation2], %s163
        %s165 = smul.u32 4, %s17
        %p166 = scmp.lt.s32.totalorder %s165, 7
        %s167 = scalar_select %p166, %s165, 7
        %s168 = smul.addr %s167, 8
        %s169 = scalar_lea.vmem %s0, %s168
        %s170 = smul.u32 4, %s17
        %s171 = smul.u32 4, %s17
        %v172 = vld [vmem:[%s169] sm:$0xff]
        %v173 = vld [vmem:[%s169 + $0x8] sm:$0xff]
        %v174 = vld [vmem:[%s169 + $0x10] sm:$0xff]
        %v175 = vld [vmem:[%s169 + $0x18] sm:$0xff]
        %v176 = vld [vmem:[%s1] sm:$0xff]
        %v177 = vld [vmem:[%s1 + $0x8] sm:$0xff]
        %v178 = vld [vmem:[%s2] sm:$0x1]
        %v180 = vperm.slane %v178, 0
        %vm182 = vcmask 130048
        %v184 = vsel %vm182, %v172, 0
        %v187 = vsel %vm182, %v173, 0
        %v190 = vsel %vm182, %v174, 0
        %v193 = vsel %vm182, %v175, 0
        %195 = vmatpush.msra.mxu0 0.0
        %196 = vmatpush.msra.mxu0 0.0
        %197 = vmatpush.msra.mxu0 0.0
        %198 = vmatpush.msra.mxu0 0.0
        %199 = vmatpush.msra.mxu0 0.0
        %200 = vmatpush.msra.mxu0 0.0
        %201 = vmatpush.msra.mxu0 0.0
        %202 = vmatpush.msra.mxu0 0.0
        %203 = vmatpush.msra.mxu0 0.0
        %204 = vmatpush.msra.mxu0 0.0
        %205 = vmatpush.msra.mxu0 0.0
        %206 = vmatpush.msra.mxu0 0.0
        %207 = vmatpush.msra.mxu0 0.0
        %208 = vmatpush.msra.mxu0 0.0
        %209 = vmatpush.msra.mxu0 %v177
        %210 = vmatpush.msra.mxu0 %v176
        %211 = vmatmul.f32.gmra.mxu0 %v184
        %v212 = vpop.f32.mrf.mxu0
        %v213 = vadd.f32 %v180, %v212
        %214 = vmatmul.f32.gmra.mxu0 %v187
        %v215 = vpop.f32.mrf.mxu0
        %v216 = vadd.f32 %v180, %v215
        %217 = vmatmul.f32.gmra.mxu0 %v190
        %v218 = vpop.f32.mrf.mxu0
        %v219 = vadd.f32 %v180, %v218
        %220 = vmatmul.f32.gmra.mxu0 %v193
        %v221 = vpop.f32.mrf.mxu0
        %v222 = vadd.f32 %v180, %v221
        %223 = vdwg.mxu0
        %224 = vst [vmem:[%s164] sm:$0xff] %v213
        %225 = vst [vmem:[%s164 + $0x8] sm:$0xff] %v216
        %226 = vst [vmem:[%s164 + $0x10] sm:$0xff] %v219
        %227 = vst [vmem:[%s164 + $0x18] sm:$0xff] %v222
        %s228 = sand.u32 %s93, 1
        %s229 = scalar_lea.sflag [#allocation3], %s228
        %s230 = sand.u32 %s93, 1
        %s231 = smul.addr %s230, 32
        %s232 = scalar_lea.vmem [#allocation2], %s231
        // Predicated region
        $region33: #{tpu_custom_call.1} parent=31 // pred_check
          %p233 = pneg %p103
        $region34: #{tpu_custom_call.1} parent=31 // pred_check_branch
          %235 = sbr.rel (%p233) target = $region36
        $region35: #{tpu_custom_call.1} parent=31 // pred_region
          %s236 = smul.u32 4, %s17
          %238 = vsyncadd %s229, 0
          %s239 = smul.addr %s236, 8
          %s240 = scalar_lea.hbm %s3, %s239
          %s241 = sshll.u32 %s232, 4
          %s242 = int_to_ptr.vmem [resolvable:$true] %s241
          %s243 = sshll.u32 %s240, 4
          %s244 = int_to_ptr.hbm [resolvable:$true] %s243
          %249 = dma.vmem_to_hbm [thread:$0]  %s242, 512, %s244, %s229, 128, 128, 8
        $region36: #{tpu_custom_call.1} parent=31 // pred_fallthru
          _
      $region32: #{tpu_custom_call.1} parent=5 // pred_fallthru
        _
      %p250 = scmp.le.s32.totalorder 2, %s12
      // Predicated region
      $region37: #{tpu_custom_call.1} parent=5 // pred_check
        %p251 = pneg %p250
      $region38: #{tpu_custom_call.1} parent=5 // pred_check_branch
        %253 = sbr.rel (%p251) target = $region40
      $region39: #{tpu_custom_call.1} parent=5 // pred_region
        %s254 = ssub.s32 %s12, 2
        // Predicated region
        $region41: #{tpu_custom_call.1} parent=39 // pred_check
          %p255 = pneg %p109
        $region42: #{tpu_custom_call.1} parent=39 // pred_check_branch
          %257 = sbr.rel (%p255) target = $region44
        $region43: #{tpu_custom_call.1} parent=39 // pred_region
          %s258 = sand.u32 %s94, 1
          %s259 = scalar_lea.sflag [#allocation3], %s258
          %s260 = sand.u32 %s94, 1
          %s261 = smul.addr %s260, 32
          %s262 = scalar_lea.vmem [#allocation2], %s261
          %264 = dma.done %s259, 512
        $region44: #{tpu_custom_call.1} parent=39 // pred_fallthru
          _
      $region40: #{tpu_custom_call.1} parent=5 // pred_fallthru
        _
    $region6: #{tpu_custom_call.1} parent=1 // loop_footer
      %s16 = sadd.s32 1, %s12
    $region7: #{tpu_custom_call.1} parent=1 // loop_footer_branch
      %11 = sbr.rel target = $region3
    $region8: #{tpu_custom_call.1} parent=1 // loop_exit
      _
    %265 = vsyncpa [#allocation3], 1
    %s266 = scalar_lea.sflag [#allocation3], 1
    %267 = vsyncpa %s266, 1

</llo_original>
